<compile_context>
chip_gen: v7x
topology: tpu7x:2x2x1
jax: 0.10.0
libtpu: 0.0.40
codegen_flags: <defaults>
</compile_context>

<pallas_src>
import functools

import jax
import jax.numpy as jnp
from jax.experimental import pallas as pl
from jax.experimental.pallas import tpu as pltpu


def _vmem_capacity_bytes() -> int:
    """Physical VMEM per TensorCore; conservative fallback if query fails."""
    try:
        cap = int(pltpu.get_tpu_info().vmem_capacity_bytes)
        if cap > 0:
            return cap
    except Exception:
        pass
    return 64 * 1024 * 1024  # v7x per-core size: safe lower bound everywhere


_VMEM_CAP = _vmem_capacity_bytes()
# Leave headroom for compiler temporaries / double buffers.
_VMEM_LIMIT_BYTES = (_VMEM_CAP * 7) // 8
# Fused-path peak live footprint is ~4x the f32 input bytes (x, sx, p copies),
# so cap the resident path at ~1/6 of physical VMEM (~21 MiB v5e/v6e, ~10 MiB v7x).
_FUSED_BYTES_THRESHOLD = _VMEM_CAP // 6


# ---------------------------------------------------------------------------
# Fused (no-grid) kernel: inputs resident in VMEM, single HBM read.
# ---------------------------------------------------------------------------
def _cmd_fused_kernel(x1_ref, x2_ref, o_ref, *, n_moments: int):
    x1 = x1_ref[...].astype(jnp.float32)
    x2 = x2_ref[...].astype(jnp.float32)

    mx1 = jnp.mean(x1, axis=0, keepdims=True)     # [1, D]
    mx2 = jnp.mean(x2, axis=0, keepdims=True)     # [1, D]

    d0 = mx1 - mx2
    scms = jnp.sqrt(jnp.sum(d0 * d0))             # matchnorm(mx1, mx2)

    sx1 = x1 - mx1
    sx2 = x2 - mx2
    p1 = sx1
    p2 = sx2
    for _ in range(n_moments - 1):                # k = 2 .. n_moments
        p1 = p1 * sx1
        p2 = p2 * sx2
        dk = jnp.mean(p1, axis=0, keepdims=True) - jnp.mean(p2, axis=0, keepdims=True)
        scms = scms + jnp.sqrt(jnp.sum(dk * dk))

    o_ref[0, 0] = scms


# ---------------------------------------------------------------------------
# Tiled streaming kernel: grid = (2 phases, num_tiles over the batch axis).
# ---------------------------------------------------------------------------
def _cmd_tiled_kernel(x1_ref, x2_ref, o_ref, sum_acc, pow_acc, mean_acc, *,
                      n_moments: int, n1: int, n2: int, tile_n: int):
    phase = pl.program_id(0)
    t = pl.program_id(1)
    nt = pl.num_programs(1)

    d = x1_ref.shape[1]
    g = tile_n // 8                               # 8-row groups per tile
    num_full1, rem1 = n1 // tile_n, n1 % tile_n   # static
    num_full2, rem2 = n2 // tile_n, n2 % tile_n   # static

    @pl.when((phase == 0) & (t == 0))
    def _init():
        sum_acc[...] = jnp.zeros_like(sum_acc)
        pow_acc[...] = jnp.zeros_like(pow_acc)

    # ---- Phase 0: per-feature batch sums (exact means). --------------------
    def _p0_accum(x_ref, idx, num_full, rem):
        # Unmasked fast path for fully-populated tiles: full-vreg VPU adds
        # into a sublane-full (8, D) accumulator -- no per-tile XLU reduce,
        # no masked partial stores.
        @pl.when(t < num_full)
        def _full():
            x = x_ref[...].astype(jnp.float32)
            sum_acc[idx] += x.reshape(g, 8, d).sum(axis=0)

        # Masked path only for the single remainder tile (statically elided
        # when the batch divides the tile).  Clamped duplicate tiles
        # (t past this input's tile count) are skipped entirely.
        if rem > 0:
            @pl.when(t == num_full)
            def _partial():
                x = x_ref[...].astype(jnp.float32)
                local = jax.lax.broadcasted_iota(jnp.int32, (tile_n, 1), 0)
                x = jnp.where(local < rem, x, 0.0)
                sum_acc[idx] += x.reshape(g, 8, d).sum(axis=0)

    @pl.when(phase == 0)
    def _phase0():
        _p0_accum(x1_ref, 0, num_full1, rem1)
        _p0_accum(x2_ref, 1, num_full2, rem2)

        @pl.when(t == nt - 1)
        def _store_means():
            # Single cross-sublane (XLU) reduce per input, once per kernel.
            mean_acc[0] = jnp.sum(sum_acc[0], axis=0, keepdims=True) * (1.0 / n1)
            mean_acc[1] = jnp.sum(sum_acc[1], axis=0, keepdims=True) * (1.0 / n2)

    # ---- Phase 1: centered power sums for k = 2 .. n_moments. --------------
    def _p1_powers(sx, idx):
        p = sx
        for j in range(n_moments - 1):            # k = 2 .. n_moments
            p = p * sx
            pow_acc[idx, j] += p.reshape(g, 8, d).sum(axis=0)

    def _p1_accum(x_ref, idx, num_full, rem):
        @pl.when(t < num_full)
        def _full():
            x = x_ref[...].astype(jnp.float32)
            _p1_powers(x - mean_acc[idx], idx)

        if rem > 0:
            @pl.when(t == num_full)
            def _partial():
                x = x_ref[...].astype(jnp.float32)
                local = jax.lax.broadcasted_iota(jnp.int32, (tile_n, 1), 0)
                sx = jnp.where(local < rem, x - mean_acc[idx], 0.0)
                _p1_powers(sx, idx)

    @pl.when(phase == 1)
    def _phase1():
        _p1_accum(x1_ref, 0, num_full1, rem1)
        _p1_accum(x2_ref, 1, num_full2, rem2)

        @pl.when(t == nt - 1)
        def _finalize():
            d0 = mean_acc[0] - mean_acc[1]
            scms = jnp.sqrt(jnp.sum(d0 * d0))
            for j in range(n_moments - 1):
                s1 = jnp.sum(pow_acc[0, j], axis=0, keepdims=True) * (1.0 / n1)
                s2 = jnp.sum(pow_acc[1, j], axis=0, keepdims=True) * (1.0 / n2)
                dk = s1 - s2
                scms = scms + jnp.sqrt(jnp.sum(dk * dk))
            o_ref[0, 0] = scms


def _choose_tile_n(d: int, n_rows_max: int, itemsize: int) -> int:
    """Pick a batch-tile size so double-buffered tiles + temporaries fit VMEM."""
    # 2 inputs x 2 pipeline buffers in the native dtype, plus ~8 f32 tile-sized
    # temporaries inside the kernel body (f32 upcasts / centered / powers).
    per_row_bytes = d * (2 * 2 * itemsize + 8 * 4)
    # ~3/8 of physical VMEM: ~48 MiB on v5e/v6e (128 MiB), ~24 MiB on v7x (64 MiB).
    budget = (_VMEM_CAP * 3) // 8
    tile = int(budget // max(per_row_bytes, 1))
    tile = max(8, min(tile, 4096))
    tile = (tile // 8) * 8
    n_pad = ((n_rows_max + 7) // 8) * 8
    return max(8, min(tile, n_pad))


def cmd(x1: jax.Array, x2: jax.Array, n_moments: int, *, tile_n=None) -> jax.Array:
    """Central Moment Discrepancy between x1 [N1, D] and x2 [N2, D]."""
    assert x1.ndim == 2 and x2.ndim == 2 and x1.shape[1] == x2.shape[1], \
        "x1, x2 must be [N, D] with matching feature dim"
    n1, d = x1.shape
    n2, _ = x2.shape
    n_moments = int(n_moments)

    f32_bytes = (n1 + n2) * d * 4
    if tile_n is None and f32_bytes <= _FUSED_BYTES_THRESHOLD:
        out = pl.pallas_call(
            functools.partial(_cmd_fused_kernel, n_moments=n_moments),
            out_shape=jax.ShapeDtypeStruct((1, 1), jnp.float32),
            in_specs=[pl.BlockSpec(memory_space=pltpu.VMEM),
                      pl.BlockSpec(memory_space=pltpu.VMEM)],
            out_specs=pl.BlockSpec(memory_space=pltpu.SMEM),
            compiler_params=pltpu.CompilerParams(
                vmem_limit_bytes=_VMEM_LIMIT_BYTES),
        )(x1, x2)
        return out[0, 0]

    # Tiled, streaming path.
    if tile_n is None:
        tile_n = _choose_tile_n(d, max(n1, n2), x1.dtype.itemsize)
    tile_n = max(8, (int(tile_n) // 8) * 8)

    t1 = pl.cdiv(n1, tile_n)
    t2 = pl.cdiv(n2, tile_n)
    nt = max(t1, t2)
    km = max(n_moments - 1, 1)

    kernel = functools.partial(_cmd_tiled_kernel, n_moments=n_moments,
                               n1=n1, n2=n2, tile_n=tile_n)

    out = pl.pallas_call(
        kernel,
        out_shape=jax.ShapeDtypeStruct((1, 1), jnp.float32),
        grid=(2, nt),
        in_specs=[
            # Clamp the block index so the shorter input re-reads its last tile
            # (the kernel skips all compute on those clamped-duplicate steps).
            pl.BlockSpec((tile_n, d),
                         lambda p, t, _last=t1 - 1: (jnp.minimum(t, _last), 0)),
            pl.BlockSpec((tile_n, d),
                         lambda p, t, _last=t2 - 1: (jnp.minimum(t, _last), 0)),
        ],
        out_specs=pl.BlockSpec(memory_space=pltpu.SMEM),
        scratch_shapes=[
            pltpu.VMEM((2, 8, d), jnp.float32),      # sublane-full batch sums
            pltpu.VMEM((2, km, 8, d), jnp.float32),  # sublane-full power sums k=2..K
            pltpu.VMEM((2, 1, d), jnp.float32),      # means (x1, x2)
        ],
        compiler_params=pltpu.CompilerParams(
            dimension_semantics=("arbitrary", "arbitrary"),
            vmem_limit_bytes=_VMEM_LIMIT_BYTES),
    )(x1, x2)
    return out[0, 0]


def _cmd_ref(x1, x2, n_moments):
    # Pure-JAX reference mirroring the PyTorch forward.
    x1 = x1.astype(jnp.float32)
    x2 = x2.astype(jnp.float32)
    mx1 = jnp.mean(x1, 0)
    mx2 = jnp.mean(x2, 0)
    sx1 = x1 - mx1
    sx2 = x2 - mx2
    scms = jnp.sqrt(jnp.sum((mx1 - mx2) ** 2))
    for i in range(n_moments - 1):
        k = i + 2
        ss1 = jnp.mean(sx1 ** k, 0)
        ss2 = jnp.mean(sx2 ** k, 0)
        scms = scms + jnp.sqrt(jnp.sum((ss1 - ss2) ** 2))
    return scms


if __name__ == "__main__":
    key = jax.random.PRNGKey(0)
    k1, k2, k3, k4 = jax.random.split(key, 4)
    n_moments = 5

    # 1) Small inputs -> fused (resident, single-HBM-read) path.
    x1s = jax.random.normal(k1, (8, 32), dtype=jnp.float32)
    x2s = jax.random.normal(k2, (8, 32), dtype=jnp.float32) * 1.2 + 0.3
    out_s = cmd(x1s, x2s, n_moments)
    jax.block_until_ready(out_s)
    ref_s = _cmd_ref(x1s, x2s, n_moments)
    assert jnp.allclose(out_s, ref_s, rtol=1e-5, atol=1e-5), (out_s, ref_s)

    # 2) Force the tiled streaming path (small tile) to exercise the 2-phase
    #    grid, remainder-row masking, clamped-duplicate skipping, and unequal
    #    batch sizes.
    x1t = jax.random.normal(k3, (200, 128), dtype=jnp.float32)
    x2t = jax.random.normal(k4, (136, 128), dtype=jnp.float32) * 0.9 + 0.25
    out_t = cmd(x1t, x2t, n_moments, tile_n=64)
    jax.block_until_ready(out_t)
    ref_t = _cmd_ref(x1t, x2t, n_moments)
    assert jnp.allclose(out_t, ref_t, rtol=2e-4, atol=2e-4), (out_t, ref_t)

    print("KERNEL_OK")
</pallas_src>

<mosaic_0001>
module attributes {stable_mosaic.version = 11 : i64} {
  func.func @_cmd_fused_kernel(%arg0: memref<8x32xf32, #tpu.memory_space<vmem>>, %arg1: memref<8x32xf32, #tpu.memory_space<vmem>>, %arg2: memref<1x1xf32, #tpu.memory_space<smem>>) attributes {dimension_semantics = [], scalar_prefetch = 0 : i64, scratch_operands = 0 : i64, tpu.core_type = #tpu.core_type<tc>} {
    %c0 = arith.constant 0 : index
    %c0_0 = arith.constant 0 : index
    %0 = vector.load %arg0[%c0, %c0_0] : memref<8x32xf32, #tpu.memory_space<vmem>>, vector<8x32xf32>
    %c0_1 = arith.constant 0 : index
    %c0_2 = arith.constant 0 : index
    %1 = vector.load %arg1[%c0_1, %c0_2] : memref<8x32xf32, #tpu.memory_space<vmem>>, vector<8x32xf32>
    %cst = arith.constant dense<0.000000e+00> : vector<32xf32>
    %2 = vector.multi_reduction <add>, %0, %cst [0] : vector<8x32xf32> to vector<32xf32>
    %3 = vector.shape_cast %2 : vector<32xf32> to vector<1x32xf32>
    %cst_3 = arith.constant 8.000000e+00 : f32
    %4 = vector.broadcast %cst_3 : f32 to vector<1x32xf32>
    %5 = arith.divf %3, %4 : vector<1x32xf32>
    %cst_4 = arith.constant dense<0.000000e+00> : vector<32xf32>
    %6 = vector.multi_reduction <add>, %1, %cst_4 [0] : vector<8x32xf32> to vector<32xf32>
    %7 = vector.shape_cast %6 : vector<32xf32> to vector<1x32xf32>
    %cst_5 = arith.constant 8.000000e+00 : f32
    %8 = vector.broadcast %cst_5 : f32 to vector<1x32xf32>
    %9 = arith.divf %7, %8 : vector<1x32xf32>
    %10 = arith.subf %5, %9 : vector<1x32xf32>
    %11 = arith.mulf %10, %10 : vector<1x32xf32>
    %12 = vector.shape_cast %11 : vector<1x32xf32> to vector<1x1x32xf32>
    %cst_6 = arith.constant dense<0.000000e+00> : vector<1xf32>
    %13 = vector.multi_reduction <add>, %12, %cst_6 [1, 2] : vector<1x1x32xf32> to vector<1xf32>
    %14 = vector.shape_cast %13 : vector<1xf32> to vector<1x1x1xf32>
    %15 = vector.extract %14[0, 0, 0] : f32 from vector<1x1x1xf32>
    %16 = math.sqrt %15 : f32
    %17 = vector.broadcast %5 : vector<1x32xf32> to vector<8x32xf32>
    %18 = arith.subf %0, %17 : vector<8x32xf32>
    %19 = vector.broadcast %9 : vector<1x32xf32> to vector<8x32xf32>
    %20 = arith.subf %1, %19 : vector<8x32xf32>
    %21 = arith.mulf %18, %18 : vector<8x32xf32>
    %22 = arith.mulf %20, %20 : vector<8x32xf32>
    %cst_7 = arith.constant dense<0.000000e+00> : vector<32xf32>
    %23 = vector.multi_reduction <add>, %21, %cst_7 [0] : vector<8x32xf32> to vector<32xf32>
    %24 = vector.shape_cast %23 : vector<32xf32> to vector<1x32xf32>
    %cst_8 = arith.constant 8.000000e+00 : f32
    %25 = vector.broadcast %cst_8 : f32 to vector<1x32xf32>
    %26 = arith.divf %24, %25 : vector<1x32xf32>
    %cst_9 = arith.constant dense<0.000000e+00> : vector<32xf32>
    %27 = vector.multi_reduction <add>, %22, %cst_9 [0] : vector<8x32xf32> to vector<32xf32>
    %28 = vector.shape_cast %27 : vector<32xf32> to vector<1x32xf32>
    %cst_10 = arith.constant 8.000000e+00 : f32
    %29 = vector.broadcast %cst_10 : f32 to vector<1x32xf32>
    %30 = arith.divf %28, %29 : vector<1x32xf32>
    %31 = arith.subf %26, %30 : vector<1x32xf32>
    %32 = arith.mulf %31, %31 : vector<1x32xf32>
    %33 = vector.shape_cast %32 : vector<1x32xf32> to vector<1x1x32xf32>
    %cst_11 = arith.constant dense<0.000000e+00> : vector<1xf32>
    %34 = vector.multi_reduction <add>, %33, %cst_11 [1, 2] : vector<1x1x32xf32> to vector<1xf32>
    %35 = vector.shape_cast %34 : vector<1xf32> to vector<1x1x1xf32>
    %36 = vector.extract %35[0, 0, 0] : f32 from vector<1x1x1xf32>
    %37 = math.sqrt %36 : f32
    %38 = arith.addf %16, %37 : f32
    %39 = arith.mulf %21, %18 : vector<8x32xf32>
    %40 = arith.mulf %22, %20 : vector<8x32xf32>
    %cst_12 = arith.constant dense<0.000000e+00> : vector<32xf32>
    %41 = vector.multi_reduction <add>, %39, %cst_12 [0] : vector<8x32xf32> to vector<32xf32>
    %42 = vector.shape_cast %41 : vector<32xf32> to vector<1x32xf32>
    %cst_13 = arith.constant 8.000000e+00 : f32
    %43 = vector.broadcast %cst_13 : f32 to vector<1x32xf32>
    %44 = arith.divf %42, %43 : vector<1x32xf32>
    %cst_14 = arith.constant dense<0.000000e+00> : vector<32xf32>
    %45 = vector.multi_reduction <add>, %40, %cst_14 [0] : vector<8x32xf32> to vector<32xf32>
    %46 = vector.shape_cast %45 : vector<32xf32> to vector<1x32xf32>
    %cst_15 = arith.constant 8.000000e+00 : f32
    %47 = vector.broadcast %cst_15 : f32 to vector<1x32xf32>
    %48 = arith.divf %46, %47 : vector<1x32xf32>
    %49 = arith.subf %44, %48 : vector<1x32xf32>
    %50 = arith.mulf %49, %49 : vector<1x32xf32>
    %51 = vector.shape_cast %50 : vector<1x32xf32> to vector<1x1x32xf32>
    %cst_16 = arith.constant dense<0.000000e+00> : vector<1xf32>
    %52 = vector.multi_reduction <add>, %51, %cst_16 [1, 2] : vector<1x1x32xf32> to vector<1xf32>
    %53 = vector.shape_cast %52 : vector<1xf32> to vector<1x1x1xf32>
    %54 = vector.extract %53[0, 0, 0] : f32 from vector<1x1x1xf32>
    %55 = math.sqrt %54 : f32
    %56 = arith.addf %38, %55 : f32
    %57 = arith.mulf %39, %18 : vector<8x32xf32>
    %58 = arith.mulf %40, %20 : vector<8x32xf32>
    %cst_17 = arith.constant dense<0.000000e+00> : vector<32xf32>
    %59 = vector.multi_reduction <add>, %57, %cst_17 [0] : vector<8x32xf32> to vector<32xf32>
    %60 = vector.shape_cast %59 : vector<32xf32> to vector<1x32xf32>
    %cst_18 = arith.constant 8.000000e+00 : f32
    %61 = vector.broadcast %cst_18 : f32 to vector<1x32xf32>
    %62 = arith.divf %60, %61 : vector<1x32xf32>
    %cst_19 = arith.constant dense<0.000000e+00> : vector<32xf32>
    %63 = vector.multi_reduction <add>, %58, %cst_19 [0] : vector<8x32xf32> to vector<32xf32>
    %64 = vector.shape_cast %63 : vector<32xf32> to vector<1x32xf32>
    %cst_20 = arith.constant 8.000000e+00 : f32
    %65 = vector.broadcast %cst_20 : f32 to vector<1x32xf32>
    %66 = arith.divf %64, %65 : vector<1x32xf32>
    %67 = arith.subf %62, %66 : vector<1x32xf32>
    %68 = arith.mulf %67, %67 : vector<1x32xf32>
    %69 = vector.shape_cast %68 : vector<1x32xf32> to vector<1x1x32xf32>
    %cst_21 = arith.constant dense<0.000000e+00> : vector<1xf32>
    %70 = vector.multi_reduction <add>, %69, %cst_21 [1, 2] : vector<1x1x32xf32> to vector<1xf32>
    %71 = vector.shape_cast %70 : vector<1xf32> to vector<1x1x1xf32>
    %72 = vector.extract %71[0, 0, 0] : f32 from vector<1x1x1xf32>
    %73 = math.sqrt %72 : f32
    %74 = arith.addf %56, %73 : f32
    %75 = arith.mulf %57, %18 : vector<8x32xf32>
    %76 = arith.mulf %58, %20 : vector<8x32xf32>
    %cst_22 = arith.constant dense<0.000000e+00> : vector<32xf32>
    %77 = vector.multi_reduction <add>, %75, %cst_22 [0] : vector<8x32xf32> to vector<32xf32>
    %78 = vector.shape_cast %77 : vector<32xf32> to vector<1x32xf32>
    %cst_23 = arith.constant 8.000000e+00 : f32
    %79 = vector.broadcast %cst_23 : f32 to vector<1x32xf32>
    %80 = arith.divf %78, %79 : vector<1x32xf32>
    %cst_24 = arith.constant dense<0.000000e+00> : vector<32xf32>
    %81 = vector.multi_reduction <add>, %76, %cst_24 [0] : vector<8x32xf32> to vector<32xf32>
    %82 = vector.shape_cast %81 : vector<32xf32> to vector<1x32xf32>
    %cst_25 = arith.constant 8.000000e+00 : f32
    %83 = vector.broadcast %cst_25 : f32 to vector<1x32xf32>
    %84 = arith.divf %82, %83 : vector<1x32xf32>
    %85 = arith.subf %80, %84 : vector<1x32xf32>
    %86 = arith.mulf %85, %85 : vector<1x32xf32>
    %87 = vector.shape_cast %86 : vector<1x32xf32> to vector<1x1x32xf32>
    %cst_26 = arith.constant dense<0.000000e+00> : vector<1xf32>
    %88 = vector.multi_reduction <add>, %87, %cst_26 [1, 2] : vector<1x1x32xf32> to vector<1xf32>
    %89 = vector.shape_cast %88 : vector<1xf32> to vector<1x1x1xf32>
    %90 = vector.extract %89[0, 0, 0] : f32 from vector<1x1x1xf32>
    %91 = math.sqrt %90 : f32
    %92 = arith.addf %74, %91 : f32
    %c0_27 = arith.constant 0 : index
    %c0_28 = arith.constant 0 : index
    %93 = memref.load %arg2[%c0_27, %c0_28] : memref<1x1xf32, #tpu.memory_space<smem>>
    memref.store %92, %arg2[%c0_27, %c0_28] : memref<1x1xf32, #tpu.memory_space<smem>>
    return
  }
}

</mosaic_0001>

<llo_original>
// kernel: tpu_custom_call.1
$region0: #{tpu_custom_call.1}
  #allocation0 [shape = 'u32[]', space=smem, size = 0x4, offset = 0x4, fixed_abs, tag = 'smem constant byte address 0x4 - core index']
  #allocation1 [shape = 'u32[144,128]{1,0:T(1,128)}', space=vmem, size = 0x12000, scoped, tag = 'internal scratch']
  %s0 = inlined_call_operand.hbm [shape: f32[8,32], index: 0, kind: input, shape index: {}]
  %s1 = inlined_call_operand.hbm [shape: f32[8,32], index: 1, kind: input, shape index: {}]
  %s2 = inlined_call_operand.hbm [shape: f32[1,1], index: 2, kind: output, shape index: {}]
  %s3 = sld [smem:[#allocation0]]
  $region26: #{tpu_custom_call.1} parent=0
    _
  %s5 = ssub.s32 1, %s3
  %s6 = scalar_select 0, %s5, %s3
  $region1: #{tpu_custom_call.1} parent=0
    #allocation2 [shape = 'u8[4096]{0}', space=vmem, size = 0x1000, scoped, tag = 'input window, operand 0, single buffered']
    #allocation3 [shape = 's32[1]{0}', space=sflag, size = 0x4, scoped, tag = 'scoped memory for tpu_custom_call.1']
    #allocation4 [shape = 's32[1]{0}', space=sflag, size = 0x4, scoped, tag = 'scoped memory for tpu_custom_call.1']
    #allocation5 [shape = 'u8[4096]{0}', space=vmem, size = 0x1000, scoped, tag = 'input window, operand 1, single buffered']
    #allocation6 [shape = 's32[1]{0}', space=sflag, size = 0x4, scoped, tag = 'scoped memory for tpu_custom_call.1']
    #allocation7 [shape = 'u8[512]{0}', space=smem, size = 0x200, scoped, tag = 'output window, operand 0, single buffered']
    %7 = vsyncpa [#allocation3], 0
    %8 = vsyncpa [#allocation6], 0
    %9 = vsyncpa [#allocation4], 0
    // Predicated region
    $region2: #{tpu_custom_call.1} parent=1 // pred_check
      _
    $region3: #{tpu_custom_call.1} parent=1 // pred_check_branch
      %11 = sbr.rel (0) target = $region5
    $region4: #{tpu_custom_call.1} parent=1 // pred_region
      %s13 = ssub.s32 128, 128
      %14 = vsyncadd [#allocation3], %s13
      %s16 = sshll.u32 [#allocation2], 4
      %s17 = int_to_ptr.vmem [resolvable:$true] %s16
      %19 = dma.hbm_to_vmem [thread:$0]  %s0, 128, %s17, [#allocation3]
    $region5: #{tpu_custom_call.1} parent=1 // pred_fallthru
      _
    // Predicated region
    $region6: #{tpu_custom_call.1} parent=1 // pred_check
      _
    $region7: #{tpu_custom_call.1} parent=1 // pred_check_branch
      %21 = sbr.rel (0) target = $region9
    $region8: #{tpu_custom_call.1} parent=1 // pred_region
      %s23 = ssub.s32 128, 128
      %24 = vsyncadd [#allocation6], %s23
      %s26 = sshll.u32 [#allocation5], 4
      %s27 = int_to_ptr.vmem [resolvable:$true] %s26
      %29 = dma.hbm_to_vmem [thread:$0]  %s1, 128, %s27, [#allocation6]
    $region9: #{tpu_custom_call.1} parent=1 // pred_fallthru
      _
    // Predicated region
    $region10: #{tpu_custom_call.1} parent=1 // pred_check
      _
    $region11: #{tpu_custom_call.1} parent=1 // pred_check_branch
      %31 = sbr.rel (0) target = $region13
    $region12: #{tpu_custom_call.1} parent=1 // pred_region
      %32 = dma.done [#allocation3], 128
    $region13: #{tpu_custom_call.1} parent=1 // pred_fallthru
      _
    // Predicated region
    $region14: #{tpu_custom_call.1} parent=1 // pred_check
      _
    $region15: #{tpu_custom_call.1} parent=1 // pred_check_branch
      %34 = sbr.rel (0) target = $region17
    $region16: #{tpu_custom_call.1} parent=1 // pred_region
      %35 = dma.done [#allocation6], 128
    $region17: #{tpu_custom_call.1} parent=1 // pred_fallthru
      _
    %v36 = vld [vmem:[#allocation2] sm:$0xff]
    %v37 = vld [vmem:[#allocation5] sm:$0xff]
    %vm38 = vcmask 261120
    %v39 = vsel %vm38, %v36, 0.0
    %v40 = vrot.slane %v39, 4
    %v41 = vadd.f32 %v39, %v40
    %v42 = vrot.slane %v41, 2
    %v43 = vadd.f32 %v41, %v42
    %v44 = vrot.slane %v43, 1
    %v45 = vadd.f32 %v43, %v44
    %v46 = vrcp.pop 8.0
    %v47 = vmul.f32 %v45, %v46
    %v48 = vsel %vm38, %v37, 0.0
    %v49 = vrot.slane %v48, 4
    %v50 = vadd.f32 %v48, %v49
    %v51 = vrot.slane %v50, 2
    %v52 = vadd.f32 %v50, %v51
    %v53 = vrot.slane %v52, 1
    %v54 = vadd.f32 %v52, %v53
    %v55 = vmul.f32 %v54, %v46
    %v56 = vsub.f32 %v47, %v55
    %v57 = vmul.f32 %v56, %v56
    %vm58 = vcmask 253952
    %v59 = vsel %vm58, %v57, 0.0
    %60 = vadd.xlane.f32.xlu0 %v59
    %v61 = vpop.xlane.xlu0 %60
    %v62 = vrot.slane %v61, 4
    %v63 = vadd.f32 %v61, %v62
    %v64 = vrot.slane %v63, 2
    %v65 = vadd.f32 %v63, %v64
    %v66 = vrot.slane %v65, 1
    %v67 = vadd.f32 %v65, %v66
    %s68 = vtos %v67
    %v69 = vstv %s68
    %v70 = vrsqrt.pop %v69
    %v71 = vmul.f32 %v69, %v70
    %vm72 = vcmp.eq.f32.partialorder %v69, inf
    %v73 = vsel %vm72, %v69, %v71
    %vm74 = vcmp.eq.f32.partialorder %v69, 0.0
    %v75 = vand.u32 %v69, 2147483648
    %v76 = vsel %vm74, %v75, %v73
    %s77 = vtos %v76
    %v78 = vsub.f32 %v36, %v47
    %v79 = vsub.f32 %v37, %v55
    %v80 = vmul.f32 %v78, %v78
    %v81 = vmul.f32 %v79, %v79
    %v82 = vsel %vm38, %v80, 0.0
    %v83 = vrot.slane %v82, 4
    %v84 = vadd.f32 %v82, %v83
    %v85 = vrot.slane %v84, 2
    %v86 = vadd.f32 %v84, %v85
    %v87 = vrot.slane %v86, 1
    %v88 = vadd.f32 %v86, %v87
    %v89 = vmul.f32 %v88, %v46
    %v90 = vsel %vm38, %v81, 0.0
    %v91 = vrot.slane %v90, 4
    %v92 = vadd.f32 %v90, %v91
    %v93 = vrot.slane %v92, 2
    %v94 = vadd.f32 %v92, %v93
    %v95 = vrot.slane %v94, 1
    %v96 = vadd.f32 %v94, %v95
    %v97 = vmul.f32 %v96, %v46
    %v98 = vsub.f32 %v89, %v97
    %v99 = vmul.f32 %v98, %v98
    %v100 = vsel %vm58, %v99, 0.0
    %101 = vadd.xlane.f32.xlu0 %v100
    %v102 = vpop.xlane.xlu0 %101
    %v103 = vrot.slane %v102, 4
    %v104 = vadd.f32 %v102, %v103
    %v105 = vrot.slane %v104, 2
    %v106 = vadd.f32 %v104, %v105
    %v107 = vrot.slane %v106, 1
    %v108 = vadd.f32 %v106, %v107
    %s109 = vtos %v108
    %v110 = vstv %s109
    %v111 = vrsqrt.pop %v110
    %v112 = vmul.f32 %v110, %v111
    %vm113 = vcmp.eq.f32.partialorder %v110, inf
    %v114 = vsel %vm113, %v110, %v112
    %vm115 = vcmp.eq.f32.partialorder %v110, 0.0
    %v116 = vand.u32 %v110, 2147483648
    %v117 = vsel %vm115, %v116, %v114
    %s118 = vtos %v117
    %s119 = sadd.f32 %s77, %s118
    %v120 = vmul.f32 %v80, %v78
    %v121 = vmul.f32 %v81, %v79
    %v122 = vsel %vm38, %v120, 0.0
    %v123 = vrot.slane %v122, 4
    %v124 = vadd.f32 %v122, %v123
    %v125 = vrot.slane %v124, 2
    %v126 = vadd.f32 %v124, %v125
    %v127 = vrot.slane %v126, 1
    %v128 = vadd.f32 %v126, %v127
    %v129 = vmul.f32 %v128, %v46
    %v130 = vsel %vm38, %v121, 0.0
    %v131 = vrot.slane %v130, 4
    %v132 = vadd.f32 %v130, %v131
    %v133 = vrot.slane %v132, 2
    %v134 = vadd.f32 %v132, %v133
    %v135 = vrot.slane %v134, 1
    %v136 = vadd.f32 %v134, %v135
    %v137 = vmul.f32 %v136, %v46
    %v138 = vsub.f32 %v129, %v137
    %v139 = vmul.f32 %v138, %v138
    %v140 = vsel %vm58, %v139, 0.0
    %141 = vadd.xlane.f32.xlu0 %v140
    %v142 = vpop.xlane.xlu0 %141
    %v143 = vrot.slane %v142, 4
    %v144 = vadd.f32 %v142, %v143
    %v145 = vrot.slane %v144, 2
    %v146 = vadd.f32 %v144, %v145
    %v147 = vrot.slane %v146, 1
    %v148 = vadd.f32 %v146, %v147
    %s149 = vtos %v148
    %v150 = vstv %s149
    %v151 = vrsqrt.pop %v150
    %v152 = vmul.f32 %v150, %v151
    %vm153 = vcmp.eq.f32.partialorder %v150, inf
    %v154 = vsel %vm153, %v150, %v152
    %vm155 = vcmp.eq.f32.partialorder %v150, 0.0
    %v156 = vand.u32 %v150, 2147483648
    %v157 = vsel %vm155, %v156, %v154
    %s158 = vtos %v157
    %s159 = sadd.f32 %s119, %s158
    %v160 = vmul.f32 %v120, %v78
    %v161 = vmul.f32 %v121, %v79
    %v162 = vsel %vm38, %v160, 0.0
    %v163 = vrot.slane %v162, 4
    %v164 = vadd.f32 %v162, %v163
    %v165 = vrot.slane %v164, 2
    %v166 = vadd.f32 %v164, %v165
    %v167 = vrot.slane %v166, 1
    %v168 = vadd.f32 %v166, %v167
    %v169 = vmul.f32 %v168, %v46
    %v170 = vsel %vm38, %v161, 0.0
    %v171 = vrot.slane %v170, 4
    %v172 = vadd.f32 %v170, %v171
    %v173 = vrot.slane %v172, 2
    %v174 = vadd.f32 %v172, %v173
    %v175 = vrot.slane %v174, 1
    %v176 = vadd.f32 %v174, %v175
    %v177 = vmul.f32 %v176, %v46
    %v178 = vsub.f32 %v169, %v177
    %v179 = vmul.f32 %v178, %v178
    %v180 = vsel %vm58, %v179, 0.0
    %181 = vadd.xlane.f32.xlu0 %v180
    %v182 = vpop.xlane.xlu0 %181
    %v183 = vrot.slane %v182, 4
    %v184 = vadd.f32 %v182, %v183
    %v185 = vrot.slane %v184, 2
    %v186 = vadd.f32 %v184, %v185
    %v187 = vrot.slane %v186, 1
    %v188 = vadd.f32 %v186, %v187
    %s189 = vtos %v188
    %v190 = vstv %s189
    %v191 = vrsqrt.pop %v190
    %v192 = vmul.f32 %v190, %v191
    %vm193 = vcmp.eq.f32.partialorder %v190, inf
    %v194 = vsel %vm193, %v190, %v192
    %vm195 = vcmp.eq.f32.partialorder %v190, 0.0
    %v196 = vand.u32 %v190, 2147483648
    %v197 = vsel %vm195, %v196, %v194
    %s198 = vtos %v197
    %s199 = sadd.f32 %s159, %s198
    %v200 = vmul.f32 %v160, %v78
    %v201 = vmul.f32 %v161, %v79
    %v202 = vsel %vm38, %v200, 0.0
    %v203 = vrot.slane %v202, 4
    %v204 = vadd.f32 %v202, %v203
    %v205 = vrot.slane %v204, 2
    %v206 = vadd.f32 %v204, %v205
    %v207 = vrot.slane %v206, 1
    %v208 = vadd.f32 %v206, %v207
    %v209 = vmul.f32 %v208, %v46
    %v210 = vsel %vm38, %v201, 0.0
    %v211 = vrot.slane %v210, 4
    %v212 = vadd.f32 %v210, %v211
    %v213 = vrot.slane %v212, 2
    %v214 = vadd.f32 %v212, %v213
    %v215 = vrot.slane %v214, 1
    %v216 = vadd.f32 %v214, %v215
    %v217 = vmul.f32 %v216, %v46
    %v218 = vsub.f32 %v209, %v217
    %v219 = vmul.f32 %v218, %v218
    %v220 = vsel %vm58, %v219, 0.0
    %221 = vadd.xlane.f32.xlu0 %v220
    %v222 = vpop.xlane.xlu0 %221
    %v223 = vrot.slane %v222, 4
    %v224 = vadd.f32 %v222, %v223
    %v225 = vrot.slane %v224, 2
    %v226 = vadd.f32 %v224, %v225
    %v227 = vrot.slane %v226, 1
    %v228 = vadd.f32 %v226, %v227
    %s229 = vtos %v228
    %v230 = vstv %s229
    %v231 = vrsqrt.pop %v230
    %v232 = vmul.f32 %v230, %v231
    %vm233 = vcmp.eq.f32.partialorder %v230, inf
    %v234 = vsel %vm233, %v230, %v232
    %vm235 = vcmp.eq.f32.partialorder %v230, 0.0
    %v236 = vand.u32 %v230, 2147483648
    %v237 = vsel %vm235, %v236, %v234
    %s238 = vtos %v237
    %s239 = sadd.f32 %s199, %s238
    %s240 = scalar_lea.smem [#allocation7], 0
    %241 = sst [smem:[%s240]] %s239
    // Predicated region
    $region18: #{tpu_custom_call.1} parent=1 // pred_check
      _
    $region19: #{tpu_custom_call.1} parent=1 // pred_check_branch
      %243 = sbr.rel (0) target = $region21
    $region20: #{tpu_custom_call.1} parent=1 // pred_region
      %s245 = ssub.s32 16, 16
      %246 = vsyncadd [#allocation4], %s245
      %249 = dma.smem_to_hbm [#allocation7], 16, %s2, [#allocation4]
    $region21: #{tpu_custom_call.1} parent=1 // pred_fallthru
      _
    // Predicated region
    $region22: #{tpu_custom_call.1} parent=1 // pred_check
      _
    $region23: #{tpu_custom_call.1} parent=1 // pred_check_branch
      %251 = sbr.rel (0) target = $region25
    $region24: #{tpu_custom_call.1} parent=1 // pred_region
      %252 = dma.done [#allocation4], 16
    $region25: #{tpu_custom_call.1} parent=1 // pred_fallthru
      _
    %253 = sfence
    %254 = vsyncpa [#allocation3], 1
    %255 = vsyncpa [#allocation6], 1
    %256 = vsyncpa [#allocation4], 1

</llo_original>
